<compile_context>
chip_gen: v6e
topology: v6e:2x2x1
jax: 0.10.0
libtpu: 0.0.40
codegen_flags: <defaults>
</compile_context>

<pallas_src>
import jax
import jax.numpy as jnp
from jax.experimental import pallas as pl
from jax.experimental.pallas import tpu as pltpu


# ---------------------------------------------------------------------------
# Parameter preparation (hoisted out of the hot path — run once).
# ---------------------------------------------------------------------------
def prepare_params(w_h, b_h, w_i, b_i):
    """PyTorch Linear params (out,in)/(out,) -> transposed weights + fused bias."""
    four_l = w_h.shape[0]
    wh_t = jnp.transpose(w_h)                 # (L, 4L)
    wi_t = jnp.transpose(w_i)                 # (E, 4L)
    bias = (b_h + b_i).reshape(1, four_l)     # (1, 4L)
    return wh_t, wi_t, bias


def _full_spec(shape):
    # grid=() -> index_map takes no grid args; whole array is one VMEM block.
    return pl.BlockSpec(shape, lambda: (0,) * len(shape))


# ---------------------------------------------------------------------------
# Single-step kernel (matches the module's forward exactly: one cell step).
# h and x are separate inputs (no wrapper-side concat / extra HBM copy).
# ---------------------------------------------------------------------------
def lstm_cell_kernel(c_ref, h_ref, x_ref, wh_ref, wi_ref, b_ref, ch_ref):
    L = c_ref.shape[-1]

    gates = (
        jnp.dot(h_ref[...], wh_ref[...], preferred_element_type=jnp.float32)
        + jnp.dot(x_ref[...], wi_ref[...], preferred_element_type=jnp.float32)
        + b_ref[...]
    )  # (B, 4L) f32

    # Full-width sigmoid once, slice f / i / o; tanh only on the g slice.
    sig = jax.nn.sigmoid(gates)
    f_t = sig[:, 0 * L:1 * L]
    i_t = sig[:, 1 * L:2 * L]
    o_t = sig[:, 3 * L:4 * L]
    g_t = jnp.tanh(gates[:, 2 * L:3 * L])

    c_t = f_t * c_ref[...].astype(jnp.float32) + i_t * g_t
    h_t = o_t * jnp.tanh(c_t)

    # Single concatenated store (B, 2L) — one output block, one writeback.
    ch_ref[...] = jnp.concatenate([c_t, h_t], axis=-1).astype(ch_ref.dtype)


def lstm_cell_v2(c_t_1, h_t_1, x_t, wh_t, wi_t, bias):
    """One LSTM cell step (module semantics). Params from prepare_params()."""
    B, L = c_t_1.shape
    E = x_t.shape[-1]

    ch = pl.pallas_call(
        lstm_cell_kernel,
        out_shape=jax.ShapeDtypeStruct((B, 2 * L), c_t_1.dtype),
        grid=(),
        in_specs=[
            _full_spec((B, L)),          # c_{t-1}
            _full_spec((B, L)),          # h_{t-1}
            _full_spec((B, E)),          # x_t
            _full_spec((L, 4 * L)),      # W_h^T
            _full_spec((E, 4 * L)),      # W_i^T
            _full_spec((1, 4 * L)),      # fused bias
        ],
        out_specs=_full_spec((B, 2 * L)),
    )(c_t_1, h_t_1, x_t, wh_t, wi_t, bias)
    return [ch[:, :L], ch[:, L:]]


# ---------------------------------------------------------------------------
# Fused-sequence kernel: T recurrent steps in ONE pallas_call (grid=()).
#   Phase 1: xproj = X_flat @ W_i^T + b  (one batch-parallel matmul, all T).
#   Phase 2: unrolled recurrence, only h_{t-1} @ W_h^T per step.
# All inputs/outputs are VMEM-resident for the whole kernel; HBM traffic is
# one DMA in per array and one DMA out per output.
# ---------------------------------------------------------------------------
def lstm_seq_kernel(c0_ref, h0_ref, x_ref, wh_ref, wi_ref, b_ref,
                    hseq_ref, ch_fin_ref, xproj_sc):
    B, L = c0_ref.shape
    T = hseq_ref.shape[0]

    # ---- Phase 1: input projection for ALL timesteps (T*B MXU rows). ----
    xproj_sc[...] = (
        jnp.dot(x_ref[...], wi_ref[...], preferred_element_type=jnp.float32)
        + b_ref[...]                      # bias folded here, not per step
    )                                     # (T*B, 4L)

    # Loop-invariant hoists.
    w_h = wh_ref[...]                     # (L, 4L), loaded once
    c0 = c0_ref[...].astype(jnp.float32)
    h0 = h0_ref[...].astype(jnp.float32)

    # ---- Phase 2: the recurrence (fully unrolled, T is small & static). ----
    def step(t, carry):
        c, h = carry
        off = pl.multiple_of(t * B, B)
        gates = (
            jnp.dot(h, w_h, preferred_element_type=jnp.float32)
            + xproj_sc[pl.ds(off, B), :]
        )                                 # (B, 4L)
        sig = jax.nn.sigmoid(gates)
        f_t = sig[:, 0 * L:1 * L]
        i_t = sig[:, 1 * L:2 * L]
        o_t = sig[:, 3 * L:4 * L]
        g_t = jnp.tanh(gates[:, 2 * L:3 * L])
        c_n = f_t * c + i_t * g_t
        h_n = o_t * jnp.tanh(c_n)
        hseq_ref[t] = h_n.astype(hseq_ref.dtype)   # VMEM store; HBM write once
        return c_n, h_n

    c_T, h_T = jax.lax.fori_loop(0, T, step, (c0, h0), unroll=True)

    # Final state written once, as a single concatenated block.
    ch_fin_ref[...] = jnp.concatenate([c_T, h_T], axis=-1).astype(
        ch_fin_ref.dtype)


def lstm_sequence(c_0, h_0, xs, wh_t, wi_t, bias):
    """Run T LSTM-cell steps in one kernel.  xs: (T, B, E).

    Returns (h_seq (T,B,L), c_T (B,L), h_T (B,L)).
    """
    T, B, E = xs.shape
    L = c_0.shape[-1]
    # Wrapper-side layout plumbing (free): present x as (T*B, E) so the
    # in-kernel projection is a single rank-2 matmul with no in-kernel reshape.
    x_flat = xs.reshape(T * B, E)

    h_seq, ch_fin = pl.pallas_call(
        lstm_seq_kernel,
        out_shape=(
            jax.ShapeDtypeStruct((T, B, L), h_0.dtype),
            jax.ShapeDtypeStruct((B, 2 * L), c_0.dtype),
        ),
        grid=(),
        in_specs=[
            _full_spec((B, L)),          # c0
            _full_spec((B, L)),          # h0
            _full_spec((T * B, E)),      # all timesteps' x, resident
            _full_spec((L, 4 * L)),      # W_h^T, resident
            _full_spec((E, 4 * L)),      # W_i^T, resident
            _full_spec((1, 4 * L)),      # fused bias, resident
        ],
        out_specs=(
            _full_spec((T, B, L)),       # h_seq (single writeback at end)
            _full_spec((B, 2 * L)),      # [c_T, h_T]
        ),
        scratch_shapes=[
            pltpu.VMEM((T * B, 4 * L), jnp.float32),   # xproj for all steps
        ],
    )(c_0, h_0, x_flat, wh_t, wi_t, bias)

    return h_seq, ch_fin[:, :L], ch_fin[:, L:]


# ---------------------------------------------------------------------------
# Pure-JAX references.
# ---------------------------------------------------------------------------
def _reference_step(c, h, x, w_h, b_h, w_i, b_i):
    L = c.shape[-1]
    gates = h @ w_h.T + b_h + x @ w_i.T + b_i
    f = jax.nn.sigmoid(gates[:, :L])
    i = jax.nn.sigmoid(gates[:, L:2 * L])
    g = jnp.tanh(gates[:, 2 * L:3 * L])
    o = jax.nn.sigmoid(gates[:, 3 * L:])
    c_new = f * c + i * g
    h_new = o * jnp.tanh(c_new)
    return c_new, h_new


if __name__ == "__main__":
    B = 8     # batch
    E = 16    # taille_embedding
    L = 32    # taille_latent  (4*L = 128 -> lane-dense gates)
    T = 8     # sequence length for the fused-sequence kernel

    key = jax.random.PRNGKey(0)
    k = jax.random.split(key, 7)
    c0 = jax.random.normal(k[0], (B, L), jnp.float32)
    h0 = jax.random.normal(k[1], (B, L), jnp.float32)
    xs = jax.random.normal(k[2], (T, B, E), jnp.float32)
    # PyTorch Linear shapes: (out, in) / (out,)
    w_h = jax.random.normal(k[3], (4 * L, L), jnp.float32) * 0.1
    b_h = jax.random.normal(k[4], (4 * L,), jnp.float32) * 0.1
    w_i = jax.random.normal(k[5], (4 * L, E), jnp.float32) * 0.1
    b_i = jax.random.normal(k[6], (4 * L,), jnp.float32) * 0.1

    # Hoisted once (not per timestep).
    wh_t, wi_t, bias = prepare_params(w_h, b_h, w_i, b_i)

    # --- single cell step (module's exact forward) ---
    c1, h1 = lstm_cell_v2(c0, h0, xs[0], wh_t, wi_t, bias)
    jax.block_until_ready((c1, h1))
    c1_ref, h1_ref = _reference_step(c0, h0, xs[0], w_h, b_h, w_i, b_i)
    assert jnp.allclose(c1, c1_ref, atol=1e-4), "single-step c_t mismatch"
    assert jnp.allclose(h1, h1_ref, atol=1e-4), "single-step h_t mismatch"

    # --- fused T-step recurrence in one pallas_call ---
    h_seq, c_T, h_T = lstm_sequence(c0, h0, xs, wh_t, wi_t, bias)
    jax.block_until_ready((h_seq, c_T, h_T))

    def scan_step(carry, x):
        c, h = carry
        c_n, h_n = _reference_step(c, h, x, w_h, b_h, w_i, b_i)
        return (c_n, h_n), h_n

    (c_T_ref, h_T_ref), h_seq_ref = jax.lax.scan(scan_step, (c0, h0), xs)
    assert jnp.allclose(h_seq, h_seq_ref, atol=1e-4), "sequence h mismatch"
    assert jnp.allclose(c_T, c_T_ref, atol=1e-4), "final c_T mismatch"
    assert jnp.allclose(h_T, h_T_ref, atol=1e-4), "final h_T mismatch"

    print("KERNEL_OK")
</pallas_src>

<mosaic_0001>
module attributes {stable_mosaic.version = 11 : i64} {
  func.func @lstm_cell_kernel(%arg0: memref<8x32xf32, #tpu.memory_space<vmem>>, %arg1: memref<8x32xf32, #tpu.memory_space<vmem>>, %arg2: memref<8x16xf32, #tpu.memory_space<vmem>>, %arg3: memref<32x128xf32, #tpu.memory_space<vmem>>, %arg4: memref<16x128xf32, #tpu.memory_space<vmem>>, %arg5: memref<1x128xf32, #tpu.memory_space<vmem>>, %arg6: memref<8x64xf32, #tpu.memory_space<vmem>>) attributes {dimension_semantics = [], scalar_prefetch = 0 : i64, scratch_operands = 0 : i64, tpu.core_type = #tpu.core_type<tc>} {
    %c0 = arith.constant 0 : index
    %c0_0 = arith.constant 0 : index
    %0 = vector.load %arg1[%c0, %c0_0] : memref<8x32xf32, #tpu.memory_space<vmem>>, vector<8x32xf32>
    %c0_1 = arith.constant 0 : index
    %c0_2 = arith.constant 0 : index
    %1 = vector.load %arg3[%c0_1, %c0_2] : memref<32x128xf32, #tpu.memory_space<vmem>>, vector<32x128xf32>
    %cst = arith.constant dense<0.000000e+00> : vector<8x128xf32>
    %2 = tpu.matmul %0, %1, %cst {dimension_numbers = #tpu.dot_dimension_numbers<[1], [0], [0], [1], [0, 0, 1, 1], [], []>} : vector<8x32xf32>, vector<32x128xf32>, vector<8x128xf32> -> vector<8x128xf32>
    %c0_3 = arith.constant 0 : index
    %c0_4 = arith.constant 0 : index
    %3 = vector.load %arg2[%c0_3, %c0_4] : memref<8x16xf32, #tpu.memory_space<vmem>>, vector<8x16xf32>
    %c0_5 = arith.constant 0 : index
    %c0_6 = arith.constant 0 : index
    %4 = vector.load %arg4[%c0_5, %c0_6] : memref<16x128xf32, #tpu.memory_space<vmem>>, vector<16x128xf32>
    %cst_7 = arith.constant dense<0.000000e+00> : vector<8x128xf32>
    %5 = tpu.matmul %3, %4, %cst_7 {dimension_numbers = #tpu.dot_dimension_numbers<[1], [0], [0], [1], [0, 0, 1, 1], [], []>} : vector<8x16xf32>, vector<16x128xf32>, vector<8x128xf32> -> vector<8x128xf32>
    %6 = arith.addf %2, %5 : vector<8x128xf32>
    %c0_8 = arith.constant 0 : index
    %c0_9 = arith.constant 0 : index
    %7 = vector.load %arg5[%c0_8, %c0_9] : memref<1x128xf32, #tpu.memory_space<vmem>>, vector<1x128xf32>
    %8 = vector.broadcast %7 : vector<1x128xf32> to vector<8x128xf32>
    %9 = arith.addf %6, %8 : vector<8x128xf32>
    %10 = arith.negf %9 : vector<8x128xf32>
    %11 = math.exp %10 : vector<8x128xf32>
    %cst_10 = arith.constant 1.000000e+00 : f32
    %12 = vector.broadcast %cst_10 : f32 to vector<8x128xf32>
    %13 = arith.addf %12, %11 : vector<8x128xf32>
    %14 = arith.divf %12, %13 : vector<8x128xf32>
    %15 = vector.extract_strided_slice %14 {offsets = [0, 0], sizes = [8, 32], strides = [1, 1]} : vector<8x128xf32> to vector<8x32xf32>
    %16 = vector.extract_strided_slice %14 {offsets = [0, 32], sizes = [8, 32], strides = [1, 1]} : vector<8x128xf32> to vector<8x32xf32>
    %17 = vector.extract_strided_slice %14 {offsets = [0, 96], sizes = [8, 32], strides = [1, 1]} : vector<8x128xf32> to vector<8x32xf32>
    %18 = vector.extract_strided_slice %9 {offsets = [0, 64], sizes = [8, 32], strides = [1, 1]} : vector<8x128xf32> to vector<8x32xf32>
    %19 = math.tanh %18 : vector<8x32xf32>
    %c0_11 = arith.constant 0 : index
    %c0_12 = arith.constant 0 : index
    %20 = vector.load %arg0[%c0_11, %c0_12] : memref<8x32xf32, #tpu.memory_space<vmem>>, vector<8x32xf32>
    %21 = arith.mulf %15, %20 : vector<8x32xf32>
    %22 = arith.mulf %16, %19 : vector<8x32xf32>
    %23 = arith.addf %21, %22 : vector<8x32xf32>
    %24 = math.tanh %23 : vector<8x32xf32>
    %25 = arith.mulf %17, %24 : vector<8x32xf32>
    %26 = tpu.concatenate %23, %25 in 1 : vector<8x32xf32>, vector<8x32xf32> -> vector<8x64xf32>
    %c0_13 = arith.constant 0 : index
    %c0_14 = arith.constant 0 : index
    %27 = vector.load %arg6[%c0_13, %c0_14] : memref<8x64xf32, #tpu.memory_space<vmem>>, vector<8x64xf32>
    tpu.vector_store %arg6[%c0_13, %c0_14], %26 {strides = array<i32>} : memref<8x64xf32, #tpu.memory_space<vmem>>, vector<8x64xf32>,
    return
  }
}

</mosaic_0001>

<llo_original>
// kernel: tpu_custom_call.1
$region0: #{tpu_custom_call.1}
  #allocation0 [shape = 'u32[]', space=smem, size = 0x4, offset = 0x4, fixed_abs, tag = 'smem constant byte address 0x4 - core index']
  #allocation1 [shape = 'u32[144,128]{1,0:T(1,128)}', space=vmem, size = 0x12000, scoped, tag = 'internal scratch']
  %s0 = inlined_call_operand.hbm [shape: f32[8,32], index: 0, kind: input, shape index: {}]
  %s1 = inlined_call_operand.hbm [shape: f32[8,32], index: 1, kind: input, shape index: {}]
  %s2 = inlined_call_operand.hbm [shape: f32[8,16], index: 2, kind: input, shape index: {}]
  %s3 = inlined_call_operand.hbm [shape: f32[32,128], index: 3, kind: input, shape index: {}]
  %s4 = inlined_call_operand.hbm [shape: f32[16,128], index: 4, kind: input, shape index: {}]
  %s5 = inlined_call_operand.vmem [shape: f32[1,128], index: 5, kind: input, shape index: {}]
  %s6 = inlined_call_operand.hbm [shape: f32[8,64], index: 6, kind: output, shape index: {}]
  %s7 = sld [smem:[#allocation0]]
  $region54: #{tpu_custom_call.1} parent=0
    _
  %s9 = ssub.s32 1, %s7
  %s10 = scalar_select 0, %s9, %s7
  $region1: #{tpu_custom_call.1} parent=0
    #allocation2 [shape = 'u8[4096]{0}', space=vmem, size = 0x1000, scoped, tag = 'input window, operand 0, single buffered']
    #allocation3 [shape = 's32[1]{0}', space=sflag, size = 0x4, scoped, tag = 'scoped memory for tpu_custom_call.1']
    #allocation4 [shape = 's32[1]{0}', space=sflag, size = 0x4, scoped, tag = 'scoped memory for tpu_custom_call.1']
    #allocation5 [shape = 'u8[4096]{0}', space=vmem, size = 0x1000, scoped, tag = 'input window, operand 1, single buffered']
    #allocation6 [shape = 's32[1]{0}', space=sflag, size = 0x4, scoped, tag = 'scoped memory for tpu_custom_call.1']
    #allocation7 [shape = 'u8[4096]{0}', space=vmem, size = 0x1000, scoped, tag = 'input window, operand 2, single buffered']
    #allocation8 [shape = 'u8[16384]{0}', space=vmem, size = 0x4000, scoped, tag = 'input window, operand 3, single buffered']
    #allocation9 [shape = 's32[1]{0}', space=sflag, size = 0x4, scoped, tag = 'scoped memory for tpu_custom_call.1']
    #allocation10 [shape = 'u8[8192]{0}', space=vmem, size = 0x2000, scoped, tag = 'input window, operand 4, single buffered']
    #allocation11 [shape = 'u8[4096]{0}', space=vmem, size = 0x1000, scoped, tag = 'output window, operand 0, single buffered']
    %11 = vsyncpa [#allocation3], 0
    %12 = vsyncpa [#allocation6], 0
    %13 = vsyncpa [#allocation9], 0
    %14 = vsyncpa [#allocation4], 0
    // Predicated region
    $region2: #{tpu_custom_call.1} parent=1 // pred_check
      _
    $region3: #{tpu_custom_call.1} parent=1 // pred_check_branch
      %16 = sbr.rel (0) target = $region5
    $region4: #{tpu_custom_call.1} parent=1 // pred_region
      %s18 = ssub.s32 128, 128
      %19 = vsyncadd [#allocation3], %s18
      %s21 = sshll.u32 [#allocation2], 4
      %s22 = int_to_ptr.vmem [resolvable:$true] %s21
      %24 = dma.hbm_to_vmem [thread:$0]  %s0, 128, %s22, [#allocation3]
    $region5: #{tpu_custom_call.1} parent=1 // pred_fallthru
      _
    // Predicated region
    $region6: #{tpu_custom_call.1} parent=1 // pred_check
      _
    $region7: #{tpu_custom_call.1} parent=1 // pred_check_branch
      %26 = sbr.rel (0) target = $region9
    $region8: #{tpu_custom_call.1} parent=1 // pred_region
      %s28 = ssub.s32 128, 128
      %29 = vsyncadd [#allocation6], %s28
      %s31 = sshll.u32 [#allocation5], 4
      %s32 = int_to_ptr.vmem [resolvable:$true] %s31
      %34 = dma.hbm_to_vmem [thread:$0]  %s1, 128, %s32, [#allocation6]
    $region9: #{tpu_custom_call.1} parent=1 // pred_fallthru
      _
    // Predicated region
    $region10: #{tpu_custom_call.1} parent=1 // pred_check
      _
    $region11: #{tpu_custom_call.1} parent=1 // pred_check_branch
      %36 = sbr.rel (0) target = $region13
    $region12: #{tpu_custom_call.1} parent=1 // pred_region
      %s38 = ssub.s32 128, 128
      %39 = vsyncadd [#allocation6], %s38
      %s41 = sshll.u32 [#allocation7], 4
      %s42 = int_to_ptr.vmem [resolvable:$true] %s41
      %44 = dma.hbm_to_vmem [thread:$0]  %s2, 128, %s42, [#allocation6]
    $region13: #{tpu_custom_call.1} parent=1 // pred_fallthru
      _
    // Predicated region
    $region14: #{tpu_custom_call.1} parent=1 // pred_check
      _
    $region15: #{tpu_custom_call.1} parent=1 // pred_check_branch
      %46 = sbr.rel (0) target = $region17
    $region16: #{tpu_custom_call.1} parent=1 // pred_region
      %s48 = ssub.s32 512, 512
      %49 = vsyncadd [#allocation9], %s48
      %s50 = sshll.u32 [#allocation8], 4
      %s51 = int_to_ptr.vmem [resolvable:$true] %s50
      %56 = dma.hbm_to_vmem [thread:$0]  %s3, 512, %s51, [#allocation9], 128, 128, 8
    $region17: #{tpu_custom_call.1} parent=1 // pred_fallthru
      _
    // Predicated region
    $region18: #{tpu_custom_call.1} parent=1 // pred_check
      _
    $region19: #{tpu_custom_call.1} parent=1 // pred_check_branch
      %58 = sbr.rel (0) target = $region21
    $region20: #{tpu_custom_call.1} parent=1 // pred_region
      %s60 = ssub.s32 256, 256
      %61 = vsyncadd [#allocation9], %s60
      %s62 = sshll.u32 [#allocation10], 4
      %s63 = int_to_ptr.vmem [resolvable:$true] %s62
      %68 = dma.hbm_to_vmem [thread:$0]  %s4, 256, %s63, [#allocation9], 128, 128, 8
    $region21: #{tpu_custom_call.1} parent=1 // pred_fallthru
      _
    // Predicated region
    $region22: #{tpu_custom_call.1} parent=1 // pred_check
      _
    $region23: #{tpu_custom_call.1} parent=1 // pred_check_branch
      %70 = sbr.rel (0) target = $region25
    $region24: #{tpu_custom_call.1} parent=1 // pred_region
      _
    $region25: #{tpu_custom_call.1} parent=1 // pred_fallthru
      _
    // Predicated region
    $region26: #{tpu_custom_call.1} parent=1 // pred_check
      _
    $region27: #{tpu_custom_call.1} parent=1 // pred_check_branch
      %72 = sbr.rel (0) target = $region29
    $region28: #{tpu_custom_call.1} parent=1 // pred_region
      %73 = dma.done [#allocation3], 128
    $region29: #{tpu_custom_call.1} parent=1 // pred_fallthru
      _
    // Predicated region
    $region30: #{tpu_custom_call.1} parent=1 // pred_check
      _
    $region31: #{tpu_custom_call.1} parent=1 // pred_check_branch
      %75 = sbr.rel (0) target = $region33
    $region32: #{tpu_custom_call.1} parent=1 // pred_region
      %76 = dma.done [#allocation6], 128
    $region33: #{tpu_custom_call.1} parent=1 // pred_fallthru
      _
    // Predicated region
    $region34: #{tpu_custom_call.1} parent=1 // pred_check
      _
    $region35: #{tpu_custom_call.1} parent=1 // pred_check_branch
      %78 = sbr.rel (0) target = $region37
    $region36: #{tpu_custom_call.1} parent=1 // pred_region
      %79 = dma.done [#allocation6], 128
    $region37: #{tpu_custom_call.1} parent=1 // pred_fallthru
      _
    // Predicated region
    $region38: #{tpu_custom_call.1} parent=1 // pred_check
      _
    $region39: #{tpu_custom_call.1} parent=1 // pred_check_branch
      %81 = sbr.rel (0) target = $region41
    $region40: #{tpu_custom_call.1} parent=1 // pred_region
      %82 = dma.done [#allocation9], 512
    $region41: #{tpu_custom_call.1} parent=1 // pred_fallthru
      _
    // Predicated region
    $region42: #{tpu_custom_call.1} parent=1 // pred_check
      _
    $region43: #{tpu_custom_call.1} parent=1 // pred_check_branch
      %84 = sbr.rel (0) target = $region45
    $region44: #{tpu_custom_call.1} parent=1 // pred_region
      %85 = dma.done [#allocation9], 256
    $region45: #{tpu_custom_call.1} parent=1 // pred_fallthru
      _
    %v86 = vld [vmem:[#allocation5] sm:$0xff]
    %v87 = vld [vmem:[#allocation8] sm:$0xff]
    %v88 = vld [vmem:[#allocation8 + $0x8] sm:$0xff]
    %v89 = vld [vmem:[#allocation8 + $0x10] sm:$0xff]
    %v90 = vld [vmem:[#allocation8 + $0x18] sm:$0xff]
    %v91 = vld [vmem:[#allocation7] sm:$0xff]
    %v92 = vld [vmem:[#allocation10] sm:$0xff]
    %v93 = vld [vmem:[#allocation10 + $0x8] sm:$0xff]
    %vm94 = vcmask 130048
    %v96 = vsel %vm94, %v91, 0
    %98 = vmatprep.subr.mxu0 0.0
    %99 = vmatpush1.msra.mxu0 0.0
    %100 = vmatprep.subr.mxu0 0.0
    %101 = vmatpush1.msra.mxu0 0.0
    %102 = vmatprep.subr.mxu0 0.0
    %103 = vmatpush1.msra.mxu0 0.0
    %104 = vmatprep.subr.mxu0 0.0
    %105 = vmatpush1.msra.mxu0 0.0
    %106 = vmatprep.subr.mxu0 0.0
    %107 = vmatpush1.msra.mxu0 0.0
    %108 = vmatprep.subr.mxu0 0.0
    %109 = vmatpush1.msra.mxu0 0.0
    %110 = vmatprep.subr.mxu0 0.0
    %111 = vmatpush1.msra.mxu0 0.0
    %112 = vmatprep.subr.mxu0 0.0
    %113 = vmatpush1.msra.mxu0 0.0
    %114 = vmatprep.subr.mxu0 0.0
    %115 = vmatpush1.msra.mxu0 0.0
    %116 = vmatprep.subr.mxu0 0.0
    %117 = vmatpush1.msra.mxu0 0.0
    %118 = vmatprep.subr.mxu0 0.0
    %119 = vmatpush1.msra.mxu0 0.0
    %120 = vmatprep.subr.mxu0 0.0
    %121 = vmatpush1.msra.mxu0 0.0
    %122 = vmatprep.subr.mxu0 0.0
    %123 = vmatpush1.msra.mxu0 0.0
    %124 = vmatprep.subr.mxu0 0.0
    %125 = vmatpush1.msra.mxu0 0.0
    %126 = vmatprep.subr.mxu0 0.0
    %127 = vmatpush1.msra.mxu0 %v93
    %128 = vmatprep.subr.mxu0 0.0
    %129 = vmatpush1.msra.mxu0 %v92
    %130 = vmatprep.subr.mxu0 0.0
    %131 = vmatpush2.msra.mxu0 0.0
    %132 = vmatprep.subr.mxu0 0.0
    %133 = vmatpush2.msra.mxu0 0.0
    %134 = vmatprep.subr.mxu0 0.0
    %135 = vmatpush2.msra.mxu0 0.0
    %136 = vmatprep.subr.mxu0 0.0
    %137 = vmatpush2.msra.mxu0 0.0
    %138 = vmatprep.subr.mxu0 0.0
    %139 = vmatpush2.msra.mxu0 0.0
    %140 = vmatprep.subr.mxu0 0.0
    %141 = vmatpush2.msra.mxu0 0.0
    %142 = vmatprep.subr.mxu0 0.0
    %143 = vmatpush2.msra.mxu0 0.0
    %144 = vmatprep.subr.mxu0 0.0
    %145 = vmatpush2.msra.mxu0 0.0
    %146 = vmatprep.subr.mxu0 0.0
    %147 = vmatpush2.msra.mxu0 0.0
    %148 = vmatprep.subr.mxu0 0.0
    %149 = vmatpush2.msra.mxu0 0.0
    %150 = vmatprep.subr.mxu0 0.0
    %151 = vmatpush2.msra.mxu0 0.0
    %152 = vmatprep.subr.mxu0 0.0
    %153 = vmatpush2.msra.mxu0 0.0
    %154 = vmatprep.subr.mxu0 0.0
    %155 = vmatpush2.msra.mxu0 0.0
    %156 = vmatprep.subr.mxu0 0.0
    %157 = vmatpush2.msra.mxu0 0.0
    %158 = vmatprep.subr.mxu0 0.0
    %159 = vmatpush2.msra.mxu0 0.0
    %160 = vmatprep.subr.mxu0 0.0
    %161 = vmatpush2.msra.mxu0 0.0
    %162 = vmatprep.mubr.f32.mxu0 0.0
    %163 = vmatmul.mubr.f32.gmra.mxu0 %v96
    %v164 = vpop.f32.mrf.mxu0
    %v165 = vadd.f32 0.0, %v164
    %v166 = vpop.f32.mrf.mxu0
    %167 = vdwg.mxu0
    %vm168 = vcmask 261120
    %v170 = vsel %vm168, %v86, 0
    %172 = vmatprep.subr.mxu0 0.0
    %173 = vmatpush1.msra.mxu0 0.0
    %174 = vmatprep.subr.mxu0 0.0
    %175 = vmatpush1.msra.mxu0 0.0
    %176 = vmatprep.subr.mxu0 0.0
    %177 = vmatpush1.msra.mxu0 0.0
    %178 = vmatprep.subr.mxu0 0.0
    %179 = vmatpush1.msra.mxu0 0.0
    %180 = vmatprep.subr.mxu0 0.0
    %181 = vmatpush1.msra.mxu0 0.0
    %182 = vmatprep.subr.mxu0 0.0
    %183 = vmatpush1.msra.mxu0 0.0
    %184 = vmatprep.subr.mxu0 0.0
    %185 = vmatpush1.msra.mxu0 0.0
    %186 = vmatprep.subr.mxu0 0.0
    %187 = vmatpush1.msra.mxu0 0.0
    %188 = vmatprep.subr.mxu0 0.0
    %189 = vmatpush1.msra.mxu0 0.0
    %190 = vmatprep.subr.mxu0 0.0
    %191 = vmatpush1.msra.mxu0 0.0
    %192 = vmatprep.subr.mxu0 0.0
    %193 = vmatpush1.msra.mxu0 0.0
    %194 = vmatprep.subr.mxu0 0.0
    %195 = vmatpush1.msra.mxu0 0.0
    %196 = vmatprep.subr.mxu0 0.0
    %197 = vmatpush1.msra.mxu0 %v90
    %198 = vmatprep.subr.mxu0 0.0
    %199 = vmatpush1.msra.mxu0 %v89
    %200 = vmatprep.subr.mxu0 0.0
    %201 = vmatpush1.msra.mxu0 %v88
    %202 = vmatprep.subr.mxu0 0.0
    %203 = vmatpush1.msra.mxu0 %v87
    %204 = vmatprep.subr.mxu0 0.0
    %205 = vmatpush2.msra.mxu0 0.0
    %206 = vmatprep.subr.mxu0 0.0
    %207 = vmatpush2.msra.mxu0 0.0
    %208 = vmatprep.subr.mxu0 0.0
    %209 = vmatpush2.msra.mxu0 0.0
    %210 = vmatprep.subr.mxu0 0.0
    %211 = vmatpush2.msra.mxu0 0.0
    %212 = vmatprep.subr.mxu0 0.0
    %213 = vmatpush2.msra.mxu0 0.0
    %214 = vmatprep.subr.mxu0 0.0
    %215 = vmatpush2.msra.mxu0 0.0
    %216 = vmatprep.subr.mxu0 0.0
    %217 = vmatpush2.msra.mxu0 0.0
    %218 = vmatprep.subr.mxu0 0.0
    %219 = vmatpush2.msra.mxu0 0.0
    %220 = vmatprep.subr.mxu0 0.0
    %221 = vmatpush2.msra.mxu0 0.0
    %222 = vmatprep.subr.mxu0 0.0
    %223 = vmatpush2.msra.mxu0 0.0
    %224 = vmatprep.subr.mxu0 0.0
    %225 = vmatpush2.msra.mxu0 0.0
    %226 = vmatprep.subr.mxu0 0.0
    %227 = vmatpush2.msra.mxu0 0.0
    %228 = vmatprep.subr.mxu0 0.0
    %229 = vmatpush2.msra.mxu0 0.0
    %230 = vmatprep.subr.mxu0 0.0
    %231 = vmatpush2.msra.mxu0 0.0
    %232 = vmatprep.subr.mxu0 0.0
    %233 = vmatpush2.msra.mxu0 0.0
    %234 = vmatprep.subr.mxu0 0.0
    %235 = vmatpush2.msra.mxu0 0.0
    %236 = vmatprep.mubr.f32.mxu0 0.0
    %237 = vmatmul.mubr.f32.gmra.mxu0 %v170
    %v238 = vpop.f32.mrf.mxu0
    %v239 = vadd.f32 %v165, %v238
    %v240 = vpop.f32.mrf.mxu0
    %241 = vdwg.mxu0
    %v242 = vld [vmem:[%s5] sm:$0x1]
    %v244 = vlaneseq
    %v245 = vshrl.u32 %v244, 7
    %v246 = vsub.s32 0, %v245
    %v247 = vrot.slane %v242, %v246
    %v249 = vadd.f32 %v239, %v247
    %v250 = vxor.u32 %v249, 2147483648
    %v251 = vmul.f32 %v250, 1.442695
    %v252 = vpow.pop %v251
    %v253 = vadd.f32 %v252, 1.0
    %v254 = vrcp.pop %v253
    %v255 = vmul.f32 1.0, %v254
    %v256 = vtanh.pop %v249
    %v257 = vld [vmem:[#allocation2] sm:$0xff]
    %v258 = vmul.f32 %v255, %v257
    %260 = vrot.lane.b32.xlu0 %v256, 96
    %v261 = vpop.permute.xlu0 %260
    %v263 = vmul.f32 %v255, %v261
    %265 = vrot.lane.b32.xlu0 %v263, 96
    %v266 = vpop.permute.xlu0 %265
    %v268 = vadd.f32 %v258, %v266
    %v269 = vtanh.pop %v268
    %271 = vrot.lane.b32.xlu0 %v269, 96
    %v272 = vpop.permute.xlu0 %271
    %v274 = vmul.f32 %v255, %v272
    %276 = vrot.lane.b32.xlu0 %v274, 64
    %v277 = vpop.permute.xlu0 %276
    %v279 = vsel %vm168, %v268, %v277
    %vm280 = vcmask 523264
    %281 = vst.msk [vmem:[#allocation11] sm:$0xff] %vm280, %v279
    // Predicated region
    $region46: #{tpu_custom_call.1} parent=1 // pred_check
      _
    $region47: #{tpu_custom_call.1} parent=1 // pred_check_branch
      %283 = sbr.rel (0) target = $region49
    $region48: #{tpu_custom_call.1} parent=1 // pred_region
      %s285 = ssub.s32 128, 128
      %286 = vsyncadd [#allocation4], %s285
      %s288 = sshll.u32 [#allocation11], 4
      %s289 = int_to_ptr.vmem [resolvable:$true] %s288
      %291 = dma.vmem_to_hbm [thread:$0]  %s289, 128, %s6, [#allocation4]
    $region49: #{tpu_custom_call.1} parent=1 // pred_fallthru
      _
    // Predicated region
    $region50: #{tpu_custom_call.1} parent=1 // pred_check
      _
    $region51: #{tpu_custom_call.1} parent=1 // pred_check_branch
      %293 = sbr.rel (0) target = $region53
    $region52: #{tpu_custom_call.1} parent=1 // pred_region
      %294 = dma.done [#allocation4], 128
    $region53: #{tpu_custom_call.1} parent=1 // pred_fallthru
      _
    %295 = vsyncpa [#allocation3], 1
    %296 = vsyncpa [#allocation6], 1
    %297 = vsyncpa [#allocation9], 1
    %298 = vsyncpa [#allocation4], 1

</llo_original>
